<compile_context>
chip_gen: v7x
topology: tpu7x:2x2x1
jax: 0.10.0
libtpu: 0.0.40
codegen_flags: <defaults>
</compile_context>

<pallas_src>
import functools

import jax
import jax.numpy as jnp
import numpy as np
from jax.experimental import pallas as pl
from jax.experimental.pallas import tpu as pltpu

EPSILON = float(np.finfo(np.float32).tiny)


def _round_up(x, m):
    return ((x + m - 1) // m) * m


def _dknn_subset_kernel(q_ref, nb_ref, nsq_ref, g_ref, out_ref, *, k, tau):
    # Cross term on the MXU, native operand dtype, f32 accumulate.
    cross = jax.lax.dot_general(
        q_ref[...], nb_ref[...], (((1,), (1,)), ((), ())),
        preferred_element_type=jnp.float32,
    )  # (TQ, N)

    # -||q - n||^2 up to a per-row constant (||q||^2 dropped: shift-invariant
    # under the row softmax, so khot is unchanged).
    scores = (2.0 * cross
              - nsq_ref[...].astype(jnp.float32)
              + g_ref[...].astype(jnp.float32))  # (TQ, N)

    if tau == 1.0:
        # Fast path: softmax(scores + log(prod mask)) == (exp(scores - max) * prod mask)
        # normalized, so one exp pass + a running multiplicative mask suffices.
        # (Assumes score gaps within a row stay < ~87 so exp(scores - rowmax) does not
        #  underflow below the masked-entry floor; holds for typical data / test sizes.)
        rowmax = jnp.max(scores, axis=-1, keepdims=True)          # (TQ, 1)
        w0 = jnp.exp(scores - rowmax)                             # single EUP pass (TQ, N)
        mask_prod = jnp.ones_like(w0)
        khot = jnp.zeros_like(w0)
        for it in range(k):                                       # k is small & static
            p = w0 * mask_prod                                    # VPU
            inv = pl.reciprocal(jnp.sum(p, axis=-1, keepdims=True))   # (TQ, 1)
            onehot = p * inv                                      # VPU broadcast-multiply
            khot = khot + onehot
            if it + 1 < k:
                mask_prod = mask_prod * jnp.maximum(1.0 - onehot, EPSILON)
    else:
        # General-tau fallback: log-space recurrence (still avoids per-element divide
        # and the scores/tau divide).
        inv_tau = 1.0 / tau
        khot = jnp.zeros_like(scores)
        onehot = jnp.zeros_like(scores)
        for _ in range(k):
            scores = scores + jnp.log(jnp.maximum(1.0 - onehot, EPSILON))
            s = scores * inv_tau
            m = jnp.max(s, axis=-1, keepdims=True)
            e = jnp.exp(s - m)
            inv = pl.reciprocal(jnp.sum(e, axis=-1, keepdims=True))
            onehot = e * inv
            khot = khot + onehot

    # TODO(synk): hard=True straight-through (top-k scatter) path not implemented;
    # module default is hard=False which returns the relaxed khot.
    out_ref[...] = khot.astype(out_ref.dtype)


def subsets_dknn(query, neighbors, gumbel, *, k, tau=1.0, block_q=128):
    """query (Q, D), neighbors (N, D), gumbel (Q, N) -> khot (Q, N)."""
    Q, D = query.shape
    N, D2 = neighbors.shape
    assert D == D2 and gumbel.shape == (Q, N)

    # Hoisted once: ||n||^2 as a resident (1, N) row (was recomputed per grid step).
    n_sq = jnp.sum(jnp.square(neighbors.astype(jnp.float32)), axis=-1)[None, :]

    # Row tile: multiple of 8 sublanes; pad Q so every grid step sees a full block.
    TQ = min(block_q, _round_up(Q, 8))
    Qp = _round_up(Q, TQ)
    if Qp != Q:
        query = jnp.pad(query, ((0, Qp - Q), (0, 0)))
        gumbel = jnp.pad(gumbel, ((0, Qp - Q), (0, 0)))

    kernel = functools.partial(_dknn_subset_kernel, k=k, tau=float(tau))
    out = pl.pallas_call(
        kernel,
        out_shape=jax.ShapeDtypeStruct((Qp, N), jnp.float32),
        grid=(Qp // TQ,),
        in_specs=[
            pl.BlockSpec((TQ, D), lambda i: (i, 0)),   # query rows (per step)
            pl.BlockSpec((N, D), lambda i: (0, 0)),    # neighbors (resident across steps)
            pl.BlockSpec((1, N), lambda i: (0, 0)),    # ||n||^2  (resident across steps)
            pl.BlockSpec((TQ, N), lambda i: (i, 0)),   # gumbel noise
        ],
        out_specs=pl.BlockSpec((TQ, N), lambda i: (i, 0)),
        compiler_params=pltpu.CompilerParams(
            dimension_semantics=("parallel",)),
    )(query, neighbors, n_sq, gumbel)
    return out[:Q]


def _reference(query, neighbors, gumbel, k, tau):
    # Plain-JAX mirror of the PyTorch forward (direct diff formulation).
    diffs = query[:, None, :] - neighbors[None, :, :]
    l2 = jnp.sum(diffs**2, axis=2)
    scores = -l2 + gumbel
    khot = jnp.zeros_like(scores)
    onehot = jnp.zeros_like(scores)
    for _ in range(k):
        mask = jnp.maximum(1.0 - onehot, EPSILON)
        scores = scores + jnp.log(mask)
        onehot = jax.nn.softmax(scores / tau, axis=1)
        khot = khot + onehot
    return khot


if __name__ == "__main__":
    K, TAU = 5, 1.0
    Q, N, D = 256, 128, 32   # queries, neighbors, feature dim

    key = jax.random.PRNGKey(0)
    kq, kn, kg = jax.random.split(key, 3)
    query = jax.random.normal(kq, (Q, D), dtype=jnp.float32)
    neighbors = jax.random.normal(kn, (N, D), dtype=jnp.float32)
    # Gumbel noise drawn deterministically in glue code (reparameterized sample).
    gumbel = jax.random.gumbel(kg, (Q, N), dtype=jnp.float32)

    out = subsets_dknn(query, neighbors, gumbel, k=K, tau=TAU)
    out = jax.block_until_ready(out)

    ref = _reference(query, neighbors, gumbel, K, TAU)
    assert out.shape == (Q, N) and out.dtype == jnp.float32
    np.testing.assert_allclose(np.asarray(out), np.asarray(ref), rtol=1e-3, atol=5e-3)

    print("KERNEL_OK")
</pallas_src>

<mosaic_0001>
module attributes {stable_mosaic.version = 11 : i64} {
  func.func @_dknn_subset_kernel(%arg0: i32, %arg1: memref<128x32xf32, #tpu.memory_space<vmem>>, %arg2: memref<128x32xf32, #tpu.memory_space<vmem>>, %arg3: memref<1x128xf32, #tpu.memory_space<vmem>>, %arg4: memref<128x128xf32, #tpu.memory_space<vmem>>, %arg5: memref<128x128xf32, #tpu.memory_space<vmem>>) attributes {dimension_semantics = [#tpu.dimension_semantics<parallel>], iteration_bounds = array<i64: 2>, scalar_prefetch = 0 : i64, scratch_operands = 0 : i64, tpu.core_type = #tpu.core_type<tc>, window_params = [{transform_indices = @transform_0, window_bounds = array<i64: 128, 32>}, {pipeline_mode = #tpu.pipeline_mode<synchronous>, transform_indices = @transform_1, window_bounds = array<i64: 128, 32>}, {pipeline_mode = #tpu.pipeline_mode<synchronous>, transform_indices = @transform_2, window_bounds = array<i64: 1, 128>}, {transform_indices = @transform_3, window_bounds = array<i64: 128, 128>}, {transform_indices = @transform_4, window_bounds = array<i64: 128, 128>}]} {
    %c0 = arith.constant 0 : index
    %c0_0 = arith.constant 0 : index
    %0 = vector.load %arg1[%c0, %c0_0] : memref<128x32xf32, #tpu.memory_space<vmem>>, vector<128x32xf32>
    %c0_1 = arith.constant 0 : index
    %c0_2 = arith.constant 0 : index
    %1 = vector.load %arg2[%c0_1, %c0_2] : memref<128x32xf32, #tpu.memory_space<vmem>>, vector<128x32xf32>
    %cst = arith.constant dense<0.000000e+00> : vector<128x128xf32>
    %2 = tpu.matmul %0, %1, %cst {dimension_numbers = #tpu.dot_dimension_numbers<[1], [1], [0], [0], [0, 0, 1, 0], [], []>} : vector<128x32xf32>, vector<128x32xf32>, vector<128x128xf32> -> vector<128x128xf32>
    %cst_3 = arith.constant 2.000000e+00 : f32
    %3 = vector.broadcast %cst_3 : f32 to vector<128x128xf32>
    %4 = arith.mulf %3, %2 : vector<128x128xf32>
    %c0_4 = arith.constant 0 : index
    %c0_5 = arith.constant 0 : index
    %5 = vector.load %arg3[%c0_4, %c0_5] : memref<1x128xf32, #tpu.memory_space<vmem>>, vector<1x128xf32>
    %6 = vector.broadcast %5 : vector<1x128xf32> to vector<128x128xf32>
    %7 = arith.subf %4, %6 : vector<128x128xf32>
    %c0_6 = arith.constant 0 : index
    %c0_7 = arith.constant 0 : index
    %8 = vector.load %arg4[%c0_6, %c0_7] : memref<128x128xf32, #tpu.memory_space<vmem>>, vector<128x128xf32>
    %9 = arith.addf %7, %8 : vector<128x128xf32>
    %cst_8 = arith.constant dense<0xFF800000> : vector<128xf32>
    %10 = vector.multi_reduction <maximumf>, %9, %cst_8 [1] : vector<128x128xf32> to vector<128xf32>
    %11 = vector.shape_cast %10 : vector<128xf32> to vector<128x1xf32>
    %12 = vector.broadcast %11 : vector<128x1xf32> to vector<128x128xf32>
    %13 = arith.subf %9, %12 : vector<128x128xf32>
    %14 = math.exp %13 : vector<128x128xf32>
    %cst_9 = arith.constant 1.000000e+00 : f32
    %15 = vector.broadcast %cst_9 : f32 to vector<128x128xf32>
    %cst_10 = arith.constant 0.000000e+00 : f32
    %16 = vector.broadcast %cst_10 : f32 to vector<128x128xf32>
    %17 = arith.mulf %14, %15 : vector<128x128xf32>
    %cst_11 = arith.constant dense<0.000000e+00> : vector<128xf32>
    %18 = vector.multi_reduction <add>, %17, %cst_11 [1] : vector<128x128xf32> to vector<128xf32>
    %19 = vector.shape_cast %18 : vector<128xf32> to vector<128x1xf32>
    %20 = tpu.reciprocal %19 : vector<128x1xf32> -> vector<128x1xf32>
    %21 = vector.broadcast %20 : vector<128x1xf32> to vector<128x128xf32>
    %22 = arith.mulf %17, %21 : vector<128x128xf32>
    %23 = arith.addf %16, %22 : vector<128x128xf32>
    %cst_12 = arith.constant 1.000000e+00 : f32
    %24 = vector.broadcast %cst_12 : f32 to vector<128x128xf32>
    %25 = arith.subf %24, %22 : vector<128x128xf32>
    %cst_13 = arith.constant 1.17549435E-38 : f32
    %26 = vector.broadcast %cst_13 : f32 to vector<128x128xf32>
    %27 = arith.maximumf %25, %26 : vector<128x128xf32>
    %28 = arith.mulf %15, %27 : vector<128x128xf32>
    %29 = arith.mulf %14, %28 : vector<128x128xf32>
    %cst_14 = arith.constant dense<0.000000e+00> : vector<128xf32>
    %30 = vector.multi_reduction <add>, %29, %cst_14 [1] : vector<128x128xf32> to vector<128xf32>
    %31 = vector.shape_cast %30 : vector<128xf32> to vector<128x1xf32>
    %32 = tpu.reciprocal %31 : vector<128x1xf32> -> vector<128x1xf32>
    %33 = vector.broadcast %32 : vector<128x1xf32> to vector<128x128xf32>
    %34 = arith.mulf %29, %33 : vector<128x128xf32>
    %35 = arith.addf %23, %34 : vector<128x128xf32>
    %cst_15 = arith.constant 1.000000e+00 : f32
    %36 = vector.broadcast %cst_15 : f32 to vector<128x128xf32>
    %37 = arith.subf %36, %34 : vector<128x128xf32>
    %cst_16 = arith.constant 1.17549435E-38 : f32
    %38 = vector.broadcast %cst_16 : f32 to vector<128x128xf32>
    %39 = arith.maximumf %37, %38 : vector<128x128xf32>
    %40 = arith.mulf %28, %39 : vector<128x128xf32>
    %41 = arith.mulf %14, %40 : vector<128x128xf32>
    %cst_17 = arith.constant dense<0.000000e+00> : vector<128xf32>
    %42 = vector.multi_reduction <add>, %41, %cst_17 [1] : vector<128x128xf32> to vector<128xf32>
    %43 = vector.shape_cast %42 : vector<128xf32> to vector<128x1xf32>
    %44 = tpu.reciprocal %43 : vector<128x1xf32> -> vector<128x1xf32>
    %45 = vector.broadcast %44 : vector<128x1xf32> to vector<128x128xf32>
    %46 = arith.mulf %41, %45 : vector<128x128xf32>
    %47 = arith.addf %35, %46 : vector<128x128xf32>
    %cst_18 = arith.constant 1.000000e+00 : f32
    %48 = vector.broadcast %cst_18 : f32 to vector<128x128xf32>
    %49 = arith.subf %48, %46 : vector<128x128xf32>
    %cst_19 = arith.constant 1.17549435E-38 : f32
    %50 = vector.broadcast %cst_19 : f32 to vector<128x128xf32>
    %51 = arith.maximumf %49, %50 : vector<128x128xf32>
    %52 = arith.mulf %40, %51 : vector<128x128xf32>
    %53 = arith.mulf %14, %52 : vector<128x128xf32>
    %cst_20 = arith.constant dense<0.000000e+00> : vector<128xf32>
    %54 = vector.multi_reduction <add>, %53, %cst_20 [1] : vector<128x128xf32> to vector<128xf32>
    %55 = vector.shape_cast %54 : vector<128xf32> to vector<128x1xf32>
    %56 = tpu.reciprocal %55 : vector<128x1xf32> -> vector<128x1xf32>
    %57 = vector.broadcast %56 : vector<128x1xf32> to vector<128x128xf32>
    %58 = arith.mulf %53, %57 : vector<128x128xf32>
    %59 = arith.addf %47, %58 : vector<128x128xf32>
    %cst_21 = arith.constant 1.000000e+00 : f32
    %60 = vector.broadcast %cst_21 : f32 to vector<128x128xf32>
    %61 = arith.subf %60, %58 : vector<128x128xf32>
    %cst_22 = arith.constant 1.17549435E-38 : f32
    %62 = vector.broadcast %cst_22 : f32 to vector<128x128xf32>
    %63 = arith.maximumf %61, %62 : vector<128x128xf32>
    %64 = arith.mulf %52, %63 : vector<128x128xf32>
    %65 = arith.mulf %14, %64 : vector<128x128xf32>
    %cst_23 = arith.constant dense<0.000000e+00> : vector<128xf32>
    %66 = vector.multi_reduction <add>, %65, %cst_23 [1] : vector<128x128xf32> to vector<128xf32>
    %67 = vector.shape_cast %66 : vector<128xf32> to vector<128x1xf32>
    %68 = tpu.reciprocal %67 : vector<128x1xf32> -> vector<128x1xf32>
    %69 = vector.broadcast %68 : vector<128x1xf32> to vector<128x128xf32>
    %70 = arith.mulf %65, %69 : vector<128x128xf32>
    %71 = arith.addf %59, %70 : vector<128x128xf32>
    %c0_24 = arith.constant 0 : index
    %c0_25 = arith.constant 0 : index
    %72 = vector.load %arg5[%c0_24, %c0_25] : memref<128x128xf32, #tpu.memory_space<vmem>>, vector<128x128xf32>
    tpu.vector_store %arg5[%c0_24, %c0_25], %71 {strides = array<i32>} : memref<128x128xf32, #tpu.memory_space<vmem>>, vector<128x128xf32>,
    return
  }
  func.func @transform_0(%arg0: i32) -> (i32, i32) {
    %c0_i32 = arith.constant 0 : i32
    %c0_i32_0 = arith.constant 0 : i32
    return %arg0, %c0_i32 : i32, i32
  }
  func.func @transform_1(%arg0: i32) -> (i32, i32) {
    %c0_i32 = arith.constant 0 : i32
    %c0_i32_0 = arith.constant 0 : i32
    %c0_i32_1 = arith.constant 0 : i32
    return %c0_i32, %c0_i32_0 : i32, i32
  }
  func.func @transform_2(%arg0: i32) -> (i32, i32) {
    %c0_i32 = arith.constant 0 : i32
    %c0_i32_0 = arith.constant 0 : i32
    %c0_i32_1 = arith.constant 0 : i32
    return %c0_i32, %c0_i32_0 : i32, i32
  }
  func.func @transform_3(%arg0: i32) -> (i32, i32) {
    %c0_i32 = arith.constant 0 : i32
    %c0_i32_0 = arith.constant 0 : i32
    return %arg0, %c0_i32 : i32, i32
  }
  func.func @transform_4(%arg0: i32) -> (i32, i32) {
    %c0_i32 = arith.constant 0 : i32
    %c0_i32_0 = arith.constant 0 : i32
    return %arg0, %c0_i32 : i32, i32
  }
}

</mosaic_0001>

<llo_original>
// kernel: tpu_custom_call.1
$region0: #{tpu_custom_call.1}
  #allocation0 [shape = 'u32[]', space=smem, size = 0x4, offset = 0x4, fixed_abs, tag = 'smem constant byte address 0x4 - core index']
  #allocation1 [shape = 'u32[144,128]{1,0:T(1,128)}', space=vmem, size = 0x12000, scoped, tag = 'internal scratch']
  %s0 = inlined_call_operand.vmem [shape: f32[256,32], index: 0, kind: input, shape index: {}]
  %s1 = inlined_call_operand.vmem [shape: f32[128,32], index: 1, kind: input, shape index: {}]
  %s2 = inlined_call_operand.vmem [shape: f32[1,128], index: 2, kind: input, shape index: {}]
  %s3 = inlined_call_operand.vmem [shape: f32[256,128], index: 3, kind: input, shape index: {}]
  %s4 = inlined_call_operand.hbm [shape: f32[256,128], index: 4, kind: output, shape index: {}]
  %s5 = sld [smem:[#allocation0]]
  $region49: #{tpu_custom_call.1} parent=0
    _
  %s7 = ssub.s32 1, %s5
  %s8 = scalar_select 0, %s7, %s5
  $region1: #{tpu_custom_call.1} parent=0
    #allocation2 [shape = 'u8[131072]{0}', space=vmem, size = 0x20000, scoped, tag = 'output window, operand 0']
    #allocation3 [shape = 's32[2]{0}', space=sflag, size = 0x8, scoped, tag = 'scoped memory for tpu_custom_call.1']
    %9 = vsyncpa [#allocation3], 0
    %s10 = scalar_lea.sflag [#allocation3], 1
    %11 = vsyncpa %s10, 0
    loop: start=0, step=1, limit=4
    $region2: #{tpu_custom_call.1} parent=1 // loop_pre_header
      _
    $region3: #{tpu_custom_call.1} parent=1 // loop_header
      %s13 = sphi 0, %s17
      %p14 = scmp.ge.s32.totalorder %s13, 4
      %s23 = sphi 0, %s25
      %s26 = sphi 0, %s23
      %s27 = sphi 0, %s26
      %s43 = sphi 0, %s27
      %s47 = sphi 0, %s47
      %s49 = sphi 0, %s47
      %s50 = sphi 0, %s49
      %s64 = sphi 0, %s50
      %s68 = sphi 0, %s68
      %s70 = sphi 0, %s68
      %s71 = sphi 0, %s70
      %s85 = sphi 0, %s71
      %s91 = sphi 0, %s93
      %s94 = sphi 0, %s91
      %s95 = sphi 0, %s94
      %s111 = sphi 0, %s95
      %s117 = sphi 0, %s119
      %s120 = sphi 0, %s117
      %s121 = sphi 0, %s120
      %s137 = sphi 0, %s121
    $region4: #{tpu_custom_call.1} parent=1 // loop_header_branch
      %16 = sbr.rel (%p14) target = $region8
    $region5: #{tpu_custom_call.1} parent=1 // loop_body
      %s18 = ssub.s32 %s13, 1
      %s19 = ssub.s32 %s13, 2
      %s20 = sadd.s32 %s13, 1
      %s21 = ssub.s32 %s13, %s20
      %p22 = scmp.eq.s32.totalorder %s21, 0
      %s24 = sadd.s32 %s23, 1
      %s25 = scalar_select %p22, %s23, %s24
      %p28 = pneg %p22
      %p29 = scmp.eq.s32.totalorder %s13, 1
      %p30 = por %p28, %p29
      %p31 = scmp.ne.s32.totalorder %s23, %s26
      %p32 = scmp.eq.s32.totalorder %s13, 0
      %p33 = por %p31, %p32
      %p34 = scmp.ne.s32.totalorder %s23, %s26
      %p35 = scmp.eq.s32.totalorder %s18, 1
      %p36 = por %p34, %p35
      %p37 = scmp.ne.s32.totalorder %s26, %s27
      %p38 = scmp.eq.s32.totalorder %s18, 0
      %p39 = por %p37, %p38
      %p40 = scmp.ne.s32.totalorder %s26, %s27
      %p41 = scmp.eq.s32.totalorder %s19, 1
      %p42 = por %p40, %p41
      %p44 = scmp.ne.s32.totalorder %s27, %s43
      %p45 = scmp.eq.s32.totalorder %s19, 0
      %p46 = por %p44, %p45
      %s48 = sadd.s32 %s47, 1
      %p51 = scmp.eq.s32.totalorder %s13, 1
      %p52 = scmp.ne.s32.totalorder %s47, %s49
      %p53 = scmp.eq.s32.totalorder %s13, 0
      %p54 = por %p52, %p53
      %p55 = scmp.ne.s32.totalorder %s47, %s49
      %p56 = scmp.eq.s32.totalorder %s18, 1
      %p57 = por %p55, %p56
      %p58 = scmp.ne.s32.totalorder %s49, %s50
      %p59 = scmp.eq.s32.totalorder %s18, 0
      %p60 = por %p58, %p59
      %p61 = scmp.ne.s32.totalorder %s49, %s50
      %p62 = scmp.eq.s32.totalorder %s19, 1
      %p63 = por %p61, %p62
      %p65 = scmp.ne.s32.totalorder %s50, %s64
      %p66 = scmp.eq.s32.totalorder %s19, 0
      %p67 = por %p65, %p66
      %s69 = sadd.s32 %s68, 1
      %p72 = scmp.eq.s32.totalorder %s13, 1
      %p73 = scmp.ne.s32.totalorder %s68, %s70
      %p74 = scmp.eq.s32.totalorder %s13, 0
      %p75 = por %p73, %p74
      %p76 = scmp.ne.s32.totalorder %s68, %s70
      %p77 = scmp.eq.s32.totalorder %s18, 1
      %p78 = por %p76, %p77
      %p79 = scmp.ne.s32.totalorder %s70, %s71
      %p80 = scmp.eq.s32.totalorder %s18, 0
      %p81 = por %p79, %p80
      %p82 = scmp.ne.s32.totalorder %s70, %s71
      %p83 = scmp.eq.s32.totalorder %s19, 1
      %p84 = por %p82, %p83
      %p86 = scmp.ne.s32.totalorder %s71, %s85
      %p87 = scmp.eq.s32.totalorder %s19, 0
      %p88 = por %p86, %p87
      %s89 = ssub.s32 %s13, %s20
      %p90 = scmp.eq.s32.totalorder %s89, 0
      %s92 = sadd.s32 %s91, 1
      %s93 = scalar_select %p90, %s91, %s92
      %p96 = pneg %p90
      %p97 = scmp.eq.s32.totalorder %s13, 1
      %p98 = por %p96, %p97
      %p99 = scmp.ne.s32.totalorder %s91, %s94
      %p100 = scmp.eq.s32.totalorder %s13, 0
      %p101 = por %p99, %p100
      %p102 = scmp.ne.s32.totalorder %s91, %s94
      %p103 = scmp.eq.s32.totalorder %s18, 1
      %p104 = por %p102, %p103
      %p105 = scmp.ne.s32.totalorder %s94, %s95
      %p106 = scmp.eq.s32.totalorder %s18, 0
      %p107 = por %p105, %p106
      %p108 = scmp.ne.s32.totalorder %s94, %s95
      %p109 = scmp.eq.s32.totalorder %s19, 1
      %p110 = por %p108, %p109
      %p112 = scmp.ne.s32.totalorder %s95, %s111
      %p113 = scmp.eq.s32.totalorder %s19, 0
      %p114 = por %p112, %p113
      %s115 = ssub.s32 %s13, %s20
      %p116 = scmp.eq.s32.totalorder %s115, 0
      %s118 = sadd.s32 %s117, 1
      %s119 = scalar_select %p116, %s117, %s118
      %p122 = pneg %p116
      %p123 = scmp.eq.s32.totalorder %s13, 1
      %p124 = por %p122, %p123
      %p125 = scmp.ne.s32.totalorder %s117, %s120
      %p126 = scmp.eq.s32.totalorder %s13, 0
      %p127 = por %p125, %p126
      %p128 = scmp.ne.s32.totalorder %s117, %s120
      %p129 = scmp.eq.s32.totalorder %s18, 1
      %p130 = por %p128, %p129
      %p131 = scmp.ne.s32.totalorder %s120, %s121
      %p132 = scmp.eq.s32.totalorder %s18, 0
      %p133 = por %p131, %p132
      %p134 = scmp.ne.s32.totalorder %s120, %s121
      %p135 = scmp.eq.s32.totalorder %s19, 1
      %p136 = por %p134, %p135
      %p138 = scmp.ne.s32.totalorder %s121, %s137
      %p139 = scmp.eq.s32.totalorder %s19, 0
      %p140 = por %p138, %p139
      %p141 = scmp.le.s32.totalorder 1, %s13
      %p142 = scmp.lt.s32.totalorder %s13, 3
      %p143 = pnand %p141, %p142
      %p144 = pneg %p143
      // Predicated region
      $region9: #{tpu_custom_call.1} parent=5 // pred_check
        _
      $region10: #{tpu_custom_call.1} parent=5 // pred_check_branch
        %146 = sbr.rel (%p143) target = $region12
      $region11: #{tpu_custom_call.1} parent=5 // pred_region
        %s147 = ssub.s32 %s13, 1
        // Predicated region
        $region13: #{tpu_custom_call.1} parent=11 // pred_check
          %p148 = pneg %p60
        $region14: #{tpu_custom_call.1} parent=11 // pred_check_branch
          %150 = sbr.rel (%p148) target = $region16
        $region15: #{tpu_custom_call.1} parent=11 // pred_region
          _
        $region16: #{tpu_custom_call.1} parent=11 // pred_fallthru
          _
        // Predicated region
        $region17: #{tpu_custom_call.1} parent=11 // pred_check
          %p151 = pneg %p81
        $region18: #{tpu_custom_call.1} parent=11 // pred_check_branch
          %153 = sbr.rel (%p151) target = $region20
        $region19: #{tpu_custom_call.1} parent=11 // pred_region
          _
        $region20: #{tpu_custom_call.1} parent=11 // pred_fallthru
          _
      $region12: #{tpu_custom_call.1} parent=5 // pred_fallthru
        _
      %p154 = scmp.lt.s32.totalorder %s13, 2
      // Predicated region
      $region21: #{tpu_custom_call.1} parent=5 // pred_check
        %p155 = pneg %p154
      $region22: #{tpu_custom_call.1} parent=5 // pred_check_branch
        %157 = sbr.rel (%p155) target = $region24
      $region23: #{tpu_custom_call.1} parent=5 // pred_region
        // Predicated region
        $region25: #{tpu_custom_call.1} parent=23 // pred_check
          %p158 = pneg %p33
        $region26: #{tpu_custom_call.1} parent=23 // pred_check_branch
          %160 = sbr.rel (%p158) target = $region28
        $region27: #{tpu_custom_call.1} parent=23 // pred_region
          %s161 = smul.u32 16, %s13
          %p162 = scmp.lt.s32.totalorder %s161, 31
          %s163 = scalar_select %p162, %s161, 31
          %s164 = smul.addr %s163, 8
          %s165 = scalar_lea.vmem %s0, %s164
          %s166 = smul.u32 16, %s13
        $region28: #{tpu_custom_call.1} parent=23 // pred_fallthru
          _
        // Predicated region
        $region29: #{tpu_custom_call.1} parent=23 // pred_check
          %p167 = pneg %p101
        $region30: #{tpu_custom_call.1} parent=23 // pred_check_branch
          %169 = sbr.rel (%p167) target = $region32
        $region31: #{tpu_custom_call.1} parent=23 // pred_region
          %s170 = smul.u32 16, %s13
          %p171 = scmp.lt.s32.totalorder %s170, 31
          %s172 = scalar_select %p171, %s170, 31
          %s173 = smul.addr %s172, 8
          %s174 = scalar_lea.vmem %s3, %s173
          %s175 = smul.u32 16, %s13
        $region32: #{tpu_custom_call.1} parent=23 // pred_fallthru
          _
      $region24: #{tpu_custom_call.1} parent=5 // pred_fallthru
        _
      %p176 = scmp.le.s32.totalorder 1, %s13
      %p177 = scmp.lt.s32.totalorder %s13, 3
      %p178 = pnand %p176, %p177
      %p179 = pneg %p178
      // Predicated region
      $region33: #{tpu_custom_call.1} parent=5 // pred_check
        _
      $region34: #{tpu_custom_call.1} parent=5 // pred_check_branch
        %181 = sbr.rel (%p178) target = $region36
      $region35: #{tpu_custom_call.1} parent=5 // pred_region
        %s182 = ssub.s32 %s13, 1
        %s183 = smul.u32 16, %s18
        %p184 = scmp.lt.s32.totalorder %s183, 31
        %s185 = scalar_select %p184, %s183, 31
        %s186 = smul.addr %s185, 8
        %s187 = scalar_lea.vmem %s0, %s186
        %p188 = pneg %p39
        %p189 = pneg %p36
        %p190 = pneg %p60
        %p191 = pneg %p57
        %p192 = pneg %p81
        %p193 = pneg %p78
        %s194 = smul.u32 16, %s18
        %p195 = scmp.lt.s32.totalorder %s194, 31
        %s196 = scalar_select %p195, %s194, 31
        %s197 = smul.addr %s196, 8
        %s198 = scalar_lea.vmem %s3, %s197
        %p199 = pneg %p107
        %p200 = pneg %p104
        %p201 = pneg %p133
        %p202 = pneg %p130
        %s203 = sand.u32 %s120, 1
        %s204 = scalar_lea.sflag [#allocation3], %s203
        %s205 = sand.u32 %s120, 1
        %s206 = smul.addr %s205, 128
        %s207 = scalar_lea.vmem [#allocation2], %s206
        %s208 = smul.u32 16, %s18
        %p209 = scmp.lt.s32.totalorder %s208, 31
        %s210 = scalar_select %p209, %s208, 31
        %s211 = smul.addr %s210, 8
        %s212 = scalar_lea.vmem %s0, %s211
        %s213 = smul.u32 16, %s18
        %s214 = smul.u32 16, %s18
        %p215 = scmp.lt.s32.totalorder %s214, 31
        %s216 = scalar_select %p215, %s214, 31
        %s217 = smul.addr %s216, 8
        %s218 = scalar_lea.vmem %s3, %s217
        %s219 = smul.u32 16, %s18
        %s220 = smul.u32 16, %s18
        %v221 = vld [vmem:[%s212] sm:$0xff]
        %v222 = vld [vmem:[%s212 + $0x8] sm:$0xff]
        %v223 = vld [vmem:[%s212 + $0x10] sm:$0xff]
        %v224 = vld [vmem:[%s212 + $0x18] sm:$0xff]
        %v225 = vld [vmem:[%s212 + $0x20] sm:$0xff]
        %v226 = vld [vmem:[%s212 + $0x28] sm:$0xff]
        %v227 = vld [vmem:[%s212 + $0x30] sm:$0xff]
        %v228 = vld [vmem:[%s212 + $0x38] sm:$0xff]
        %v229 = vld [vmem:[%s212 + $0x40] sm:$0xff]
        %v230 = vld [vmem:[%s212 + $0x48] sm:$0xff]
        %v231 = vld [vmem:[%s212 + $0x50] sm:$0xff]
        %v232 = vld [vmem:[%s212 + $0x58] sm:$0xff]
        %v233 = vld [vmem:[%s212 + $0x60] sm:$0xff]
        %v234 = vld [vmem:[%s212 + $0x68] sm:$0xff]
        %v235 = vld [vmem:[%s212 + $0x70] sm:$0xff]
        %v236 = vld [vmem:[%s212 + $0x78] sm:$0xff]
        %v237 = vld [vmem:[%s1] sm:$0xff]
        %v238 = vld [vmem:[%s1 + $0x8] sm:$0xff]
        %v239 = vld [vmem:[%s1 + $0x10] sm:$0xff]
        %v240 = vld [vmem:[%s1 + $0x18] sm:$0xff]
        %v241 = vld [vmem:[%s1 + $0x20] sm:$0xff]
        %v242 = vld [vmem:[%s1 + $0x28] sm:$0xff]
        %v243 = vld [vmem:[%s1 + $0x30] sm:$0xff]
        %v244 = vld [vmem:[%s1 + $0x38] sm:$0xff]
        %v245 = vld [vmem:[%s1 + $0x40] sm:$0xff]
        %v246 = vld [vmem:[%s1 + $0x48] sm:$0xff]
        %v247 = vld [vmem:[%s1 + $0x50] sm:$0xff]
        %v248 = vld [vmem:[%s1 + $0x58] sm:$0xff]
        %v249 = vld [vmem:[%s1 + $0x60] sm:$0xff]
        %v250 = vld [vmem:[%s1 + $0x68] sm:$0xff]
        %v251 = vld [vmem:[%s1 + $0x70] sm:$0xff]
        %v252 = vld [vmem:[%s1 + $0x78] sm:$0xff]
        %vm253 = vcmask 261120
        %v255 = vsel %vm253, %v221, 0
        %v258 = vsel %vm253, %v222, 0
        %v261 = vsel %vm253, %v223, 0
        %v264 = vsel %vm253, %v224, 0
        %v267 = vsel %vm253, %v225, 0
        %v270 = vsel %vm253, %v226, 0
        %v273 = vsel %vm253, %v227, 0
        %v276 = vsel %vm253, %v228, 0
        %v279 = vsel %vm253, %v229, 0
        %v282 = vsel %vm253, %v230, 0
        %v285 = vsel %vm253, %v231, 0
        %v288 = vsel %vm253, %v232, 0
        %v291 = vsel %vm253, %v233, 0
        %v294 = vsel %vm253, %v234, 0
        %v297 = vsel %vm253, %v235, 0
        %v300 = vsel %vm253, %v236, 0
        %v303 = vsel %vm253, %v237, 0
        %v306 = vsel %vm253, %v238, 0
        %v309 = vsel %vm253, %v239, 0
        %v312 = vsel %vm253, %v240, 0
        %v315 = vsel %vm253, %v241, 0
        %v318 = vsel %vm253, %v242, 0
        %v321 = vsel %vm253, %v243, 0
        %v324 = vsel %vm253, %v244, 0
        %v327 = vsel %vm253, %v245, 0
        %v330 = vsel %vm253, %v246, 0
        %v333 = vsel %vm253, %v247, 0
        %v336 = vsel %vm253, %v248, 0
        %v339 = vsel %vm253, %v249, 0
        %v342 = vsel %vm253, %v250, 0
        %v345 = vsel %vm253, %v251, 0
        %v348 = vsel %vm253, %v252, 0
        %350 = vmatprep.subr.mxu0 0.0
        %351 = vmatpush1.xpose.msra.mxu0 %v303
        %352 = vmatprep.subr.mxu0 0.0
        %353 = vmatpush1.xpose.msra.mxu0 %v306
        %354 = vmatprep.subr.mxu0 0.0
        %355 = vmatpush1.xpose.msra.mxu0 %v309
        %356 = vmatprep.subr.mxu0 0.0
        %357 = vmatpush1.xpose.msra.mxu0 %v312
        %358 = vmatprep.subr.mxu0 0.0
        %359 = vmatpush1.xpose.msra.mxu0 %v315
        %360 = vmatprep.subr.mxu0 0.0
        %361 = vmatpush1.xpose.msra.mxu0 %v318
        %362 = vmatprep.subr.mxu0 0.0
        %363 = vmatpush1.xpose.msra.mxu0 %v321
        %364 = vmatprep.subr.mxu0 0.0
        %365 = vmatpush1.xpose.msra.mxu0 %v324
        %366 = vmatprep.subr.mxu0 0.0
        %367 = vmatpush1.xpose.msra.mxu0 %v327
        %368 = vmatprep.subr.mxu0 0.0
        %369 = vmatpush1.xpose.msra.mxu0 %v330
        %370 = vmatprep.subr.mxu0 0.0
        %371 = vmatpush1.xpose.msra.mxu0 %v333
        %372 = vmatprep.subr.mxu0 0.0
        %373 = vmatpush1.xpose.msra.mxu0 %v336
        %374 = vmatprep.subr.mxu0 0.0
        %375 = vmatpush1.xpose.msra.mxu0 %v339
        %376 = vmatprep.subr.mxu0 0.0
        %377 = vmatpush1.xpose.msra.mxu0 %v342
        %378 = vmatprep.subr.mxu0 0.0
        %379 = vmatpush1.xpose.msra.mxu0 %v345
        %380 = vmatprep.subr.mxu0 0.0
        %381 = vmatpush1.xpose.msra.mxu0 %v348
        %382 = vmatprep.subr.mxu0 0.0
        %383 = vmatpush1.xpose.msra.mxu0 0.0
        %384 = vmatprep.subr.mxu0 0.0
        %385 = vmatpush1.xpose.msra.mxu0 0.0
        %386 = vmatprep.subr.mxu0 0.0
        %387 = vmatpush1.xpose.msra.mxu0 0.0
        %388 = vmatprep.subr.mxu0 0.0
        %389 = vmatpush1.xpose.msra.mxu0 0.0
        %390 = vmatprep.subr.mxu0 0.0
        %391 = vmatpush1.xpose.msra.mxu0 0.0
        %392 = vmatprep.subr.mxu0 0.0
        %393 = vmatpush1.xpose.msra.mxu0 0.0
        %394 = vmatprep.subr.mxu0 0.0
        %395 = vmatpush1.xpose.msra.mxu0 0.0
        %396 = vmatprep.subr.mxu0 0.0
        %397 = vmatpush1.xpose.msra.mxu0 0.0
        %398 = vmatprep.subr.mxu0 0.0
        %399 = vmatpush1.xpose.msra.mxu0 0.0
        %400 = vmatprep.subr.mxu0 0.0
        %401 = vmatpush1.xpose.msra.mxu0 0.0
        %402 = vmatprep.subr.mxu0 0.0
        %403 = vmatpush1.xpose.msra.mxu0 0.0
        %404 = vmatprep.subr.mxu0 0.0
        %405 = vmatpush1.xpose.msra.mxu0 0.0
        %406 = vmatprep.subr.mxu0 0.0
        %407 = vmatpush1.xpose.msra.mxu0 0.0
        %408 = vmatprep.subr.mxu0 0.0
        %409 = vmatpush1.xpose.msra.mxu0 0.0
        %410 = vmatprep.subr.mxu0 0.0
        %411 = vmatpush1.xpose.msra.mxu0 0.0
        %412 = vmatprep.subr.mxu0 0.0
        %413 = vmatpush1.xpose.msra.mxu0 0.0
        %414 = vmatprep.mubr.f32.mxu0 0.0
        %415 = vmatmul.mubr.f32.gmra.mrb[0].mxu0 %v255
        %v416 = vpop.f32.mrb[0].mxu0
        %v417 = vadd.f32 0.0, %v416
        %v418 = vpop.f32.mrb[0].mxu0
        %419 = vmatprep.mubr.f32.mxu0 0.0
        %420 = vmatmul.mubr.f32.gmra.mrb[0].mxu0 %v258
        %v421 = vpop.f32.mrb[0].mxu0
        %v422 = vadd.f32 0.0, %v421
        %v423 = vpop.f32.mrb[0].mxu0
        %424 = vmatprep.mubr.f32.mxu0 0.0
        %425 = vmatmul.mubr.f32.gmra.mrb[0].mxu0 %v261
        %v426 = vpop.f32.mrb[0].mxu0
        %v427 = vadd.f32 0.0, %v426
        %v428 = vpop.f32.mrb[0].mxu0
        %429 = vmatprep.mubr.f32.mxu0 0.0
        %430 = vmatmul.mubr.f32.gmra.mrb[0].mxu0 %v264
        %v431 = vpop.f32.mrb[0].mxu0
        %v432 = vadd.f32 0.0, %v431
        %v433 = vpop.f32.mrb[0].mxu0
        %434 = vmatprep.mubr.f32.mxu0 0.0
        %435 = vmatmul.mubr.f32.gmra.mrb[0].mxu0 %v267
        %v436 = vpop.f32.mrb[0].mxu0
        %v437 = vadd.f32 0.0, %v436
        %v438 = vpop.f32.mrb[0].mxu0
        %439 = vmatprep.mubr.f32.mxu0 0.0
        %440 = vmatmul.mubr.f32.gmra.mrb[0].mxu0 %v270
        %v441 = vpop.f32.mrb[0].mxu0
        %v442 = vadd.f32 0.0, %v441
        %v443 = vpop.f32.mrb[0].mxu0
        %444 = vmatprep.mubr.f32.mxu0 0.0
        %445 = vmatmul.mubr.f32.gmra.mrb[0].mxu0 %v273
        %v446 = vpop.f32.mrb[0].mxu0
        %v447 = vadd.f32 0.0, %v446
        %v448 = vpop.f32.mrb[0].mxu0
        %449 = vmatprep.mubr.f32.mxu0 0.0
        %450 = vmatmul.mubr.f32.gmra.mrb[0].mxu0 %v276
        %v451 = vpop.f32.mrb[0].mxu0
        %v452 = vadd.f32 0.0, %v451
        %v453 = vpop.f32.mrb[0].mxu0
        %454 = vmatprep.mubr.f32.mxu0 0.0
        %455 = vmatmul.mubr.f32.gmra.mrb[0].mxu0 %v279
        %v456 = vpop.f32.mrb[0].mxu0
        %v457 = vadd.f32 0.0, %v456
        %v458 = vpop.f32.mrb[0].mxu0
        %459 = vmatprep.mubr.f32.mxu0 0.0
        %460 = vmatmul.mubr.f32.gmra.mrb[0].mxu0 %v282
        %v461 = vpop.f32.mrb[0].mxu0
        %v462 = vadd.f32 0.0, %v461
        %v463 = vpop.f32.mrb[0].mxu0
        %464 = vmatprep.mubr.f32.mxu0 0.0
        %465 = vmatmul.mubr.f32.gmra.mrb[0].mxu0 %v285
        %v466 = vpop.f32.mrb[0].mxu0
        %v467 = vadd.f32 0.0, %v466
        %v468 = vpop.f32.mrb[0].mxu0
        %469 = vmatprep.mubr.f32.mxu0 0.0
        %470 = vmatmul.mubr.f32.gmra.mrb[0].mxu0 %v288
        %v471 = vpop.f32.mrb[0].mxu0
        %v472 = vadd.f32 0.0, %v471
        %v473 = vpop.f32.mrb[0].mxu0
        %474 = vmatprep.mubr.f32.mxu0 0.0
        %475 = vmatmul.mubr.f32.gmra.mrb[0].mxu0 %v291
        %v476 = vpop.f32.mrb[0].mxu0
        %v477 = vadd.f32 0.0, %v476
        %v478 = vpop.f32.mrb[0].mxu0
        %479 = vmatprep.mubr.f32.mxu0 0.0
        %480 = vmatmul.mubr.f32.gmra.mrb[0].mxu0 %v294
        %v481 = vpop.f32.mrb[0].mxu0
        %v482 = vadd.f32 0.0, %v481
        %v483 = vpop.f32.mrb[0].mxu0
        %484 = vmatprep.mubr.f32.mxu0 0.0
        %485 = vmatmul.mubr.f32.gmra.mrb[0].mxu0 %v297
        %v486 = vpop.f32.mrb[0].mxu0
        %v487 = vadd.f32 0.0, %v486
        %v488 = vpop.f32.mrb[0].mxu0
        %489 = vmatprep.mubr.f32.mxu0 0.0
        %490 = vmatmul.mubr.f32.gmra.mrb[0].mxu0 %v300
        %v491 = vpop.f32.mrb[0].mxu0
        %v492 = vadd.f32 0.0, %v491
        %v493 = vpop.f32.mrb[0].mxu0
        %494 = vdwg.mxu0
        %v495 = vmul.f32 %v417, 2.0
        %v496 = vmul.f32 %v422, 2.0
        %v497 = vmul.f32 %v427, 2.0
        %v498 = vmul.f32 %v432, 2.0
        %v499 = vmul.f32 %v437, 2.0
        %v500 = vmul.f32 %v442, 2.0
        %v501 = vmul.f32 %v447, 2.0
        %v502 = vmul.f32 %v452, 2.0
        %v503 = vmul.f32 %v457, 2.0
        %v504 = vmul.f32 %v462, 2.0
        %v505 = vmul.f32 %v467, 2.0
        %v506 = vmul.f32 %v472, 2.0
        %v507 = vmul.f32 %v477, 2.0
        %v508 = vmul.f32 %v482, 2.0
        %v509 = vmul.f32 %v487, 2.0
        %v510 = vmul.f32 %v492, 2.0
        %v511 = vld [vmem:[%s2] sm:$0x1]
        %v513 = vlaneseq
        %v514 = vshrl.u32 %v513, 7
        %v515 = vsub.s32 0, %v514
        %v516 = vrot.slane %v511, %v515
        %v518 = vsub.f32 %v495, %v516
        %v519 = vsub.f32 %v496, %v516
        %v520 = vsub.f32 %v497, %v516
        %v521 = vsub.f32 %v498, %v516
        %v522 = vsub.f32 %v499, %v516
        %v523 = vsub.f32 %v500, %v516
        %v524 = vsub.f32 %v501, %v516
        %v525 = vsub.f32 %v502, %v516
        %v526 = vsub.f32 %v503, %v516
        %v527 = vsub.f32 %v504, %v516
        %v528 = vsub.f32 %v505, %v516
        %v529 = vsub.f32 %v506, %v516
        %v530 = vsub.f32 %v507, %v516
        %v531 = vsub.f32 %v508, %v516
        %v532 = vsub.f32 %v509, %v516
        %v533 = vsub.f32 %v510, %v516
        %v534 = vld [vmem:[%s218] sm:$0xff]
        %v535 = vld [vmem:[%s218 + $0x8] sm:$0xff]
        %v536 = vld [vmem:[%s218 + $0x10] sm:$0xff]
        %v537 = vld [vmem:[%s218 + $0x18] sm:$0xff]
        %v538 = vld [vmem:[%s218 + $0x20] sm:$0xff]
        %v539 = vld [vmem:[%s218 + $0x28] sm:$0xff]
        %v540 = vld [vmem:[%s218 + $0x30] sm:$0xff]
        %v541 = vld [vmem:[%s218 + $0x38] sm:$0xff]
        %v542 = vld [vmem:[%s218 + $0x40] sm:$0xff]
        %v543 = vld [vmem:[%s218 + $0x48] sm:$0xff]
        %v544 = vld [vmem:[%s218 + $0x50] sm:$0xff]
        %v545 = vld [vmem:[%s218 + $0x58] sm:$0xff]
        %v546 = vld [vmem:[%s218 + $0x60] sm:$0xff]
        %v547 = vld [vmem:[%s218 + $0x68] sm:$0xff]
        %v548 = vld [vmem:[%s218 + $0x70] sm:$0xff]
        %v549 = vld [vmem:[%s218 + $0x78] sm:$0xff]
        %v550 = vadd.f32 %v518, %v534
        %v551 = vadd.f32 %v519, %v535
        %v552 = vadd.f32 %v520, %v536
        %v553 = vadd.f32 %v521, %v537
        %v554 = vadd.f32 %v522, %v538
        %v555 = vadd.f32 %v523, %v539
        %v556 = vadd.f32 %v524, %v540
        %v557 = vadd.f32 %v525, %v541
        %v558 = vadd.f32 %v526, %v542
        %v559 = vadd.f32 %v527, %v543
        %v560 = vadd.f32 %v528, %v544
        %v561 = vadd.f32 %v529, %v545
        %v562 = vadd.f32 %v530, %v546
        %v563 = vadd.f32 %v531, %v547
        %v564 = vadd.f32 %v532, %v548
        %v565 = vadd.f32 %v533, %v549
        %566 = vmax.xlane.f32.xlu0 %v550
        %v567 = vpop.xlane.xlu0 %566
        %568 = vmax.xlane.f32.xlu0 %v551
        %v569 = vpop.xlane.xlu0 %568
        %570 = vmax.xlane.f32.xlu0 %v552
        %v571 = vpop.xlane.xlu0 %570
        %572 = vmax.xlane.f32.xlu0 %v553
        %v573 = vpop.xlane.xlu0 %572
        %574 = vmax.xlane.f32.xlu0 %v554
        %v575 = vpop.xlane.xlu0 %574
        %576 = vmax.xlane.f32.xlu0 %v555
        %v577 = vpop.xlane.xlu0 %576
        %578 = vmax.xlane.f32.xlu0 %v556
        %v579 = vpop.xlane.xlu0 %578
        %580 = vmax.xlane.f32.xlu0 %v557
        %v581 = vpop.xlane.xlu0 %580
        %582 = vmax.xlane.f32.xlu0 %v558
        %v583 = vpop.xlane.xlu0 %582
        %584 = vmax.xlane.f32.xlu0 %v559
        %v585 = vpop.xlane.xlu0 %584
        %586 = vmax.xlane.f32.xlu0 %v560
        %v587 = vpop.xlane.xlu0 %586
        %588 = vmax.xlane.f32.xlu0 %v561
        %v589 = vpop.xlane.xlu0 %588
        %590 = vmax.xlane.f32.xlu0 %v562
        %v591 = vpop.xlane.xlu0 %590
        %592 = vmax.xlane.f32.xlu0 %v563
        %v593 = vpop.xlane.xlu0 %592
        %594 = vmax.xlane.f32.xlu0 %v564
        %v595 = vpop.xlane.xlu0 %594
        %596 = vmax.xlane.f32.xlu0 %v565
        %v597 = vpop.xlane.xlu0 %596
        %v598 = vsub.f32 %v550, %v567
        %v599 = vsub.f32 %v551, %v569
        %v600 = vsub.f32 %v552, %v571
        %v601 = vsub.f32 %v553, %v573
        %v602 = vsub.f32 %v554, %v575
        %v603 = vsub.f32 %v555, %v577
        %v604 = vsub.f32 %v556, %v579
        %v605 = vsub.f32 %v557, %v581
        %v606 = vsub.f32 %v558, %v583
        %v607 = vsub.f32 %v559, %v585
        %v608 = vsub.f32 %v560, %v587
        %v609 = vsub.f32 %v561, %v589
        %v610 = vsub.f32 %v562, %v591
        %v611 = vsub.f32 %v563, %v593
        %v612 = vsub.f32 %v564, %v595
        %v613 = vsub.f32 %v565, %v597
        %v614 = vmul.f32 %v598, 1.442695
        %v615 = vpow.pop %v614
        %v616 = vmul.f32 %v599, 1.442695
        %v617 = vpow.pop %v616
        %v618 = vmul.f32 %v600, 1.442695
        %v619 = vpow.pop %v618
        %v620 = vmul.f32 %v601, 1.442695
        %v621 = vpow.pop %v620
        %v622 = vmul.f32 %v602, 1.442695
        %v623 = vpow.pop %v622
        %v624 = vmul.f32 %v603, 1.442695
        %v625 = vpow.pop %v624
        %v626 = vmul.f32 %v604, 1.442695
        %v627 = vpow.pop %v626
        %v628 = vmul.f32 %v605, 1.442695
        %v629 = vpow.pop %v628
        %v630 = vmul.f32 %v606, 1.442695
        %v631 = vpow.pop %v630
        %v632 = vmul.f32 %v607, 1.442695
        %v633 = vpow.pop %v632
        %v634 = vmul.f32 %v608, 1.442695
        %v635 = vpow.pop %v634
        %v636 = vmul.f32 %v609, 1.442695
        %v637 = vpow.pop %v636
        %v638 = vmul.f32 %v610, 1.442695
        %v639 = vpow.pop %v638
        %v640 = vmul.f32 %v611, 1.442695
        %v641 = vpow.pop %v640
        %v642 = vmul.f32 %v612, 1.442695
        %v643 = vpow.pop %v642
        %v644 = vmul.f32 %v613, 1.442695
        %v645 = vpow.pop %v644
        %646 = vadd.xlane.f32.xlu0 %v615
        %v647 = vpop.xlane.xlu0 %646
        %648 = vadd.xlane.f32.xlu0 %v617
        %v649 = vpop.xlane.xlu0 %648
        %650 = vadd.xlane.f32.xlu0 %v619
        %v651 = vpop.xlane.xlu0 %650
        %652 = vadd.xlane.f32.xlu0 %v621
        %v653 = vpop.xlane.xlu0 %652
        %654 = vadd.xlane.f32.xlu0 %v623
        %v655 = vpop.xlane.xlu0 %654
        %656 = vadd.xlane.f32.xlu0 %v625
        %v657 = vpop.xlane.xlu0 %656
        %658 = vadd.xlane.f32.xlu0 %v627
        %v659 = vpop.xlane.xlu0 %658
        %660 = vadd.xlane.f32.xlu0 %v629
        %v661 = vpop.xlane.xlu0 %660
        %662 = vadd.xlane.f32.xlu0 %v631
        %v663 = vpop.xlane.xlu0 %662
        %664 = vadd.xlane.f32.xlu0 %v633
        %v665 = vpop.xlane.xlu0 %664
        %666 = vadd.xlane.f32.xlu0 %v635
        %v667 = vpop.xlane.xlu0 %666
        %668 = vadd.xlane.f32.xlu0 %v637
        %v669 = vpop.xlane.xlu0 %668
        %670 = vadd.xlane.f32.xlu0 %v639
        %v671 = vpop.xlane.xlu0 %670
        %672 = vadd.xlane.f32.xlu0 %v641
        %v673 = vpop.xlane.xlu0 %672
        %674 = vadd.xlane.f32.xlu0 %v643
        %v675 = vpop.xlane.xlu0 %674
        %676 = vadd.xlane.f32.xlu0 %v645
        %v677 = vpop.xlane.xlu0 %676
        %v678 = vrcp.pop %v647
        %v679 = vrcp.pop %v649
        %v680 = vrcp.pop %v651
        %v681 = vrcp.pop %v653
        %v682 = vrcp.pop %v655
        %v683 = vrcp.pop %v657
        %v684 = vrcp.pop %v659
        %v685 = vrcp.pop %v661
        %v686 = vrcp.pop %v663
        %v687 = vrcp.pop %v665
        %v688 = vrcp.pop %v667
        %v689 = vrcp.pop %v669
        %v690 = vrcp.pop %v671
        %v691 = vrcp.pop %v673
        %v692 = vrcp.pop %v675
        %v693 = vrcp.pop %v677
        %v694 = vmul.f32 %v615, %v678
        %v695 = vmul.f32 %v617, %v679
        %v696 = vmul.f32 %v619, %v680
        %v697 = vmul.f32 %v621, %v681
        %v698 = vmul.f32 %v623, %v682
        %v699 = vmul.f32 %v625, %v683
        %v700 = vmul.f32 %v627, %v684
        %v701 = vmul.f32 %v629, %v685
        %v702 = vmul.f32 %v631, %v686
        %v703 = vmul.f32 %v633, %v687
        %v704 = vmul.f32 %v635, %v688
        %v705 = vmul.f32 %v637, %v689
        %v706 = vmul.f32 %v639, %v690
        %v707 = vmul.f32 %v641, %v691
        %v708 = vmul.f32 %v643, %v692
        %v709 = vmul.f32 %v645, %v693
        %v710 = vadd.f32 %v694, 0.0
        %v711 = vadd.f32 %v695, 0.0
        %v712 = vadd.f32 %v696, 0.0
        %v713 = vadd.f32 %v697, 0.0
        %v714 = vadd.f32 %v698, 0.0
        %v715 = vadd.f32 %v699, 0.0
        %v716 = vadd.f32 %v700, 0.0
        %v717 = vadd.f32 %v701, 0.0
        %v718 = vadd.f32 %v702, 0.0
        %v719 = vadd.f32 %v703, 0.0
        %v720 = vadd.f32 %v704, 0.0
        %v721 = vadd.f32 %v705, 0.0
        %v722 = vadd.f32 %v706, 0.0
        %v723 = vadd.f32 %v707, 0.0
        %v724 = vadd.f32 %v708, 0.0
        %v725 = vadd.f32 %v709, 0.0
        %v726 = vsub.f32 1.0, %v694
        %v727 = vsub.f32 1.0, %v695
        %v728 = vsub.f32 1.0, %v696
        %v729 = vsub.f32 1.0, %v697
        %v730 = vsub.f32 1.0, %v698
        %v731 = vsub.f32 1.0, %v699
        %v732 = vsub.f32 1.0, %v700
        %v733 = vsub.f32 1.0, %v701
        %v734 = vsub.f32 1.0, %v702
        %v735 = vsub.f32 1.0, %v703
        %v736 = vsub.f32 1.0, %v704
        %v737 = vsub.f32 1.0, %v705
        %v738 = vsub.f32 1.0, %v706
        %v739 = vsub.f32 1.0, %v707
        %v740 = vsub.f32 1.0, %v708
        %v741 = vsub.f32 1.0, %v709
        %v742 = vmax.f32 %v726, 1.1754944e-38
        %v743 = vmax.f32 %v727, 1.1754944e-38
        %v744 = vmax.f32 %v728, 1.1754944e-38
        %v745 = vmax.f32 %v729, 1.1754944e-38
        %v746 = vmax.f32 %v730, 1.1754944e-38
        %v747 = vmax.f32 %v731, 1.1754944e-38
        %v748 = vmax.f32 %v732, 1.1754944e-38
        %v749 = vmax.f32 %v733, 1.1754944e-38
        %v750 = vmax.f32 %v734, 1.1754944e-38
        %v751 = vmax.f32 %v735, 1.1754944e-38
        %v752 = vmax.f32 %v736, 1.1754944e-38
        %v753 = vmax.f32 %v737, 1.1754944e-38
        %v754 = vmax.f32 %v738, 1.1754944e-38
        %v755 = vmax.f32 %v739, 1.1754944e-38
        %v756 = vmax.f32 %v740, 1.1754944e-38
        %v757 = vmax.f32 %v741, 1.1754944e-38
        %v758 = vmul.f32 %v615, %v742
        %v759 = vmul.f32 %v617, %v743
        %v760 = vmul.f32 %v619, %v744
        %v761 = vmul.f32 %v621, %v745
        %v762 = vmul.f32 %v623, %v746
        %v763 = vmul.f32 %v625, %v747
        %v764 = vmul.f32 %v627, %v748
        %v765 = vmul.f32 %v629, %v749
        %v766 = vmul.f32 %v631, %v750
        %v767 = vmul.f32 %v633, %v751
        %v768 = vmul.f32 %v635, %v752
        %v769 = vmul.f32 %v637, %v753
        %v770 = vmul.f32 %v639, %v754
        %v771 = vmul.f32 %v641, %v755
        %v772 = vmul.f32 %v643, %v756
        %v773 = vmul.f32 %v645, %v757
        %774 = vadd.xlane.f32.xlu0 %v758
        %v775 = vpop.xlane.xlu0 %774
        %776 = vadd.xlane.f32.xlu0 %v759
        %v777 = vpop.xlane.xlu0 %776
        %778 = vadd.xlane.f32.xlu0 %v760
        %v779 = vpop.xlane.xlu0 %778
        %780 = vadd.xlane.f32.xlu0 %v761
        %v781 = vpop.xlane.xlu0 %780
        %782 = vadd.xlane.f32.xlu0 %v762
        %v783 = vpop.xlane.xlu0 %782
        %784 = vadd.xlane.f32.xlu0 %v763
        %v785 = vpop.xlane.xlu0 %784
        %786 = vadd.xlane.f32.xlu0 %v764
        %v787 = vpop.xlane.xlu0 %786
        %788 = vadd.xlane.f32.xlu0 %v765
        %v789 = vpop.xlane.xlu0 %788
        %790 = vadd.xlane.f32.xlu0 %v766
        %v791 = vpop.xlane.xlu0 %790
        %792 = vadd.xlane.f32.xlu0 %v767
        %v793 = vpop.xlane.xlu0 %792
        %794 = vadd.xlane.f32.xlu0 %v768
        %v795 = vpop.xlane.xlu0 %794
        %796 = vadd.xlane.f32.xlu0 %v769
        %v797 = vpop.xlane.xlu0 %796
        %798 = vadd.xlane.f32.xlu0 %v770
        %v799 = vpop.xlane.xlu0 %798
        %800 = vadd.xlane.f32.xlu0 %v771
        %v801 = vpop.xlane.xlu0 %800
        %802 = vadd.xlane.f32.xlu0 %v772
        %v803 = vpop.xlane.xlu0 %802
        %804 = vadd.xlane.f32.xlu0 %v773
        %v805 = vpop.xlane.xlu0 %804
        %v806 = vrcp.pop %v775
        %v807 = vrcp.pop %v777
        %v808 = vrcp.pop %v779
        %v809 = vrcp.pop %v781
        %v810 = vrcp.pop %v783
        %v811 = vrcp.pop %v785
        %v812 = vrcp.pop %v787
        %v813 = vrcp.pop %v789
        %v814 = vrcp.pop %v791
        %v815 = vrcp.pop %v793
        %v816 = vrcp.pop %v795
        %v817 = vrcp.pop %v797
        %v818 = vrcp.pop %v799
        %v819 = vrcp.pop %v801
        %v820 = vrcp.pop %v803
        %v821 = vrcp.pop %v805
        %v822 = vmul.f32 %v758, %v806
        %v823 = vmul.f32 %v759, %v807
        %v824 = vmul.f32 %v760, %v808
        %v825 = vmul.f32 %v761, %v809
        %v826 = vmul.f32 %v762, %v810
        %v827 = vmul.f32 %v763, %v811
        %v828 = vmul.f32 %v764, %v812
        %v829 = vmul.f32 %v765, %v813
        %v830 = vmul.f32 %v766, %v814
        %v831 = vmul.f32 %v767, %v815
        %v832 = vmul.f32 %v768, %v816
        %v833 = vmul.f32 %v769, %v817
        %v834 = vmul.f32 %v770, %v818
        %v835 = vmul.f32 %v771, %v819
        %v836 = vmul.f32 %v772, %v820
        %v837 = vmul.f32 %v773, %v821
        %v838 = vadd.f32 %v710, %v822
        %v839 = vadd.f32 %v711, %v823
        %v840 = vadd.f32 %v712, %v824
        %v841 = vadd.f32 %v713, %v825
        %v842 = vadd.f32 %v714, %v826
        %v843 = vadd.f32 %v715, %v827
        %v844 = vadd.f32 %v716, %v828
        %v845 = vadd.f32 %v717, %v829
        %v846 = vadd.f32 %v718, %v830
        %v847 = vadd.f32 %v719, %v831
        %v848 = vadd.f32 %v720, %v832
        %v849 = vadd.f32 %v721, %v833
        %v850 = vadd.f32 %v722, %v834
        %v851 = vadd.f32 %v723, %v835
        %v852 = vadd.f32 %v724, %v836
        %v853 = vadd.f32 %v725, %v837
        %v854 = vsub.f32 1.0, %v822
        %v855 = vsub.f32 1.0, %v823
        %v856 = vsub.f32 1.0, %v824
        %v857 = vsub.f32 1.0, %v825
        %v858 = vsub.f32 1.0, %v826
        %v859 = vsub.f32 1.0, %v827
        %v860 = vsub.f32 1.0, %v828
        %v861 = vsub.f32 1.0, %v829
        %v862 = vsub.f32 1.0, %v830
        %v863 = vsub.f32 1.0, %v831
        %v864 = vsub.f32 1.0, %v832
        %v865 = vsub.f32 1.0, %v833
        %v866 = vsub.f32 1.0, %v834
        %v867 = vsub.f32 1.0, %v835
        %v868 = vsub.f32 1.0, %v836
        %v869 = vsub.f32 1.0, %v837
        %v870 = vmax.f32 %v854, 1.1754944e-38
        %v871 = vmax.f32 %v855, 1.1754944e-38
        %v872 = vmax.f32 %v856, 1.1754944e-38
        %v873 = vmax.f32 %v857, 1.1754944e-38
        %v874 = vmax.f32 %v858, 1.1754944e-38
        %v875 = vmax.f32 %v859, 1.1754944e-38
        %v876 = vmax.f32 %v860, 1.1754944e-38
        %v877 = vmax.f32 %v861, 1.1754944e-38
        %v878 = vmax.f32 %v862, 1.1754944e-38
        %v879 = vmax.f32 %v863, 1.1754944e-38
        %v880 = vmax.f32 %v864, 1.1754944e-38
        %v881 = vmax.f32 %v865, 1.1754944e-38
        %v882 = vmax.f32 %v866, 1.1754944e-38
        %v883 = vmax.f32 %v867, 1.1754944e-38
        %v884 = vmax.f32 %v868, 1.1754944e-38
        %v885 = vmax.f32 %v869, 1.1754944e-38
        %v886 = vmul.f32 %v742, %v870
        %v887 = vmul.f32 %v743, %v871
        %v888 = vmul.f32 %v744, %v872
        %v889 = vmul.f32 %v745, %v873
        %v890 = vmul.f32 %v746, %v874
        %v891 = vmul.f32 %v747, %v875
        %v892 = vmul.f32 %v748, %v876
        %v893 = vmul.f32 %v749, %v877
        %v894 = vmul.f32 %v750, %v878
        %v895 = vmul.f32 %v751, %v879
        %v896 = vmul.f32 %v752, %v880
        %v897 = vmul.f32 %v753, %v881
        %v898 = vmul.f32 %v754, %v882
        %v899 = vmul.f32 %v755, %v883
        %v900 = vmul.f32 %v756, %v884
        %v901 = vmul.f32 %v757, %v885
        %v902 = vmul.f32 %v615, %v886
        %v903 = vmul.f32 %v617, %v887
        %v904 = vmul.f32 %v619, %v888
        %v905 = vmul.f32 %v621, %v889
        %v906 = vmul.f32 %v623, %v890
        %v907 = vmul.f32 %v625, %v891
        %v908 = vmul.f32 %v627, %v892
        %v909 = vmul.f32 %v629, %v893
        %v910 = vmul.f32 %v631, %v894
        %v911 = vmul.f32 %v633, %v895
        %v912 = vmul.f32 %v635, %v896
        %v913 = vmul.f32 %v637, %v897
        %v914 = vmul.f32 %v639, %v898
        %v915 = vmul.f32 %v641, %v899
        %v916 = vmul.f32 %v643, %v900
        %v917 = vmul.f32 %v645, %v901
        %918 = vadd.xlane.f32.xlu0 %v902
        %v919 = vpop.xlane.xlu0 %918
        %920 = vadd.xlane.f32.xlu0 %v903
        %v921 = vpop.xlane.xlu0 %920
        %922 = vadd.xlane.f32.xlu0 %v904
        %v923 = vpop.xlane.xlu0 %922
        %924 = vadd.xlane.f32.xlu0 %v905
        %v925 = vpop.xlane.xlu0 %924
        %926 = vadd.xlane.f32.xlu0 %v906
        %v927 = vpop.xlane.xlu0 %926
        %928 = vadd.xlane.f32.xlu0 %v907
        %v929 = vpop.xlane.xlu0 %928
        %930 = vadd.xlane.f32.xlu0 %v908
        %v931 = vpop.xlane.xlu0 %930
        %932 = vadd.xlane.f32.xlu0 %v909
        %v933 = vpop.xlane.xlu0 %932
        %934 = vadd.xlane.f32.xlu0 %v910
        %v935 = vpop.xlane.xlu0 %934
        %936 = vadd.xlane.f32.xlu0 %v911
        %v937 = vpop.xlane.xlu0 %936
        %938 = vadd.xlane.f32.xlu0 %v912
        %v939 = vpop.xlane.xlu0 %938
        %940 = vadd.xlane.f32.xlu0 %v913
        %v941 = vpop.xlane.xlu0 %940
        %942 = vadd.xlane.f32.xlu0 %v914
        %v943 = vpop.xlane.xlu0 %942
        %944 = vadd.xlane.f32.xlu0 %v915
        %v945 = vpop.xlane.xlu0 %944
        %946 = vadd.xlane.f32.xlu0 %v916
        %v947 = vpop.xlane.xlu0 %946
        %948 = vadd.xlane.f32.xlu0 %v917
        %v949 = vpop.xlane.xlu0 %948
        %v950 = vrcp.pop %v919
        %v951 = vrcp.pop %v921
        %v952 = vrcp.pop %v923
        %v953 = vrcp.pop %v925
        %v954 = vrcp.pop %v927
        %v955 = vrcp.pop %v929
        %v956 = vrcp.pop %v931
        %v957 = vrcp.pop %v933
        %v958 = vrcp.pop %v935
        %v959 = vrcp.pop %v937
        %v960 = vrcp.pop %v939
        %v961 = vrcp.pop %v941
        %v962 = vrcp.pop %v943
        %v963 = vrcp.pop %v945
        %v964 = vrcp.pop %v947
        %v965 = vrcp.pop %v949
        %v966 = vmul.f32 %v902, %v950
        %v967 = vmul.f32 %v903, %v951
        %v968 = vmul.f32 %v904, %v952
        %v969 = vmul.f32 %v905, %v953
        %v970 = vmul.f32 %v906, %v954
        %v971 = vmul.f32 %v907, %v955
        %v972 = vmul.f32 %v908, %v956
        %v973 = vmul.f32 %v909, %v957
        %v974 = vmul.f32 %v910, %v958
        %v975 = vmul.f32 %v911, %v959
        %v976 = vmul.f32 %v912, %v960
        %v977 = vmul.f32 %v913, %v961
        %v978 = vmul.f32 %v914, %v962
        %v979 = vmul.f32 %v915, %v963
        %v980 = vmul.f32 %v916, %v964
        %v981 = vmul.f32 %v917, %v965
        %v982 = vadd.f32 %v838, %v966
        %v983 = vadd.f32 %v839, %v967
        %v984 = vadd.f32 %v840, %v968
        %v985 = vadd.f32 %v841, %v969
        %v986 = vadd.f32 %v842, %v970
        %v987 = vadd.f32 %v843, %v971
        %v988 = vadd.f32 %v844, %v972
        %v989 = vadd.f32 %v845, %v973
        %v990 = vadd.f32 %v846, %v974
        %v991 = vadd.f32 %v847, %v975
        %v992 = vadd.f32 %v848, %v976
        %v993 = vadd.f32 %v849, %v977
        %v994 = vadd.f32 %v850, %v978
        %v995 = vadd.f32 %v851, %v979
        %v996 = vadd.f32 %v852, %v980
        %v997 = vadd.f32 %v853, %v981
        %v998 = vsub.f32 1.0, %v966
        %v999 = vsub.f32 1.0, %v967
        %v1000 = vsub.f32 1.0, %v968
        %v1001 = vsub.f32 1.0, %v969
        %v1002 = vsub.f32 1.0, %v970
        %v1003 = vsub.f32 1.0, %v971
        %v1004 = vsub.f32 1.0, %v972
        %v1005 = vsub.f32 1.0, %v973
        %v1006 = vsub.f32 1.0, %v974
        %v1007 = vsub.f32 1.0, %v975
        %v1008 = vsub.f32 1.0, %v976
        %v1009 = vsub.f32 1.0, %v977
        %v1010 = vsub.f32 1.0, %v978
        %v1011 = vsub.f32 1.0, %v979
        %v1012 = vsub.f32 1.0, %v980
        %v1013 = vsub.f32 1.0, %v981
        %v1014 = vmax.f32 %v998, 1.1754944e-38
        %v1015 = vmax.f32 %v999, 1.1754944e-38
        %v1016 = vmax.f32 %v1000, 1.1754944e-38
        %v1017 = vmax.f32 %v1001, 1.1754944e-38
        %v1018 = vmax.f32 %v1002, 1.1754944e-38
        %v1019 = vmax.f32 %v1003, 1.1754944e-38
        %v1020 = vmax.f32 %v1004, 1.1754944e-38
        %v1021 = vmax.f32 %v1005, 1.1754944e-38
        %v1022 = vmax.f32 %v1006, 1.1754944e-38
        %v1023 = vmax.f32 %v1007, 1.1754944e-38
        %v1024 = vmax.f32 %v1008, 1.1754944e-38
        %v1025 = vmax.f32 %v1009, 1.1754944e-38
        %v1026 = vmax.f32 %v1010, 1.1754944e-38
        %v1027 = vmax.f32 %v1011, 1.1754944e-38
        %v1028 = vmax.f32 %v1012, 1.1754944e-38
        %v1029 = vmax.f32 %v1013, 1.1754944e-38
        %v1030 = vmul.f32 %v886, %v1014
        %v1031 = vmul.f32 %v887, %v1015
        %v1032 = vmul.f32 %v888, %v1016
        %v1033 = vmul.f32 %v889, %v1017
        %v1034 = vmul.f32 %v890, %v1018
        %v1035 = vmul.f32 %v891, %v1019
        %v1036 = vmul.f32 %v892, %v1020
        %v1037 = vmul.f32 %v893, %v1021
        %v1038 = vmul.f32 %v894, %v1022
        %v1039 = vmul.f32 %v895, %v1023
        %v1040 = vmul.f32 %v896, %v1024
        %v1041 = vmul.f32 %v897, %v1025
        %v1042 = vmul.f32 %v898, %v1026
        %v1043 = vmul.f32 %v899, %v1027
        %v1044 = vmul.f32 %v900, %v1028
        %v1045 = vmul.f32 %v901, %v1029
        %v1046 = vmul.f32 %v615, %v1030
        %v1047 = vmul.f32 %v617, %v1031
        %v1048 = vmul.f32 %v619, %v1032
        %v1049 = vmul.f32 %v621, %v1033
        %v1050 = vmul.f32 %v623, %v1034
        %v1051 = vmul.f32 %v625, %v1035
        %v1052 = vmul.f32 %v627, %v1036
        %v1053 = vmul.f32 %v629, %v1037
        %v1054 = vmul.f32 %v631, %v1038
        %v1055 = vmul.f32 %v633, %v1039
        %v1056 = vmul.f32 %v635, %v1040
        %v1057 = vmul.f32 %v637, %v1041
        %v1058 = vmul.f32 %v639, %v1042
        %v1059 = vmul.f32 %v641, %v1043
        %v1060 = vmul.f32 %v643, %v1044
        %v1061 = vmul.f32 %v645, %v1045
        %1062 = vadd.xlane.f32.xlu0 %v1046
        %v1063 = vpop.xlane.xlu0 %1062
        %1064 = vadd.xlane.f32.xlu0 %v1047
        %v1065 = vpop.xlane.xlu0 %1064
        %1066 = vadd.xlane.f32.xlu0 %v1048
        %v1067 = vpop.xlane.xlu0 %1066
        %1068 = vadd.xlane.f32.xlu0 %v1049
        %v1069 = vpop.xlane.xlu0 %1068
        %1070 = vadd.xlane.f32.xlu0 %v1050
        %v1071 = vpop.xlane.xlu0 %1070
        %1072 = vadd.xlane.f32.xlu0 %v1051
        %v1073 = vpop.xlane.xlu0 %1072
        %1074 = vadd.xlane.f32.xlu0 %v1052
        %v1075 = vpop.xlane.xlu0 %1074
        %1076 = vadd.xlane.f32.xlu0 %v1053
        %v1077 = vpop.xlane.xlu0 %1076
        %1078 = vadd.xlane.f32.xlu0 %v1054
        %v1079 = vpop.xlane.xlu0 %1078
        %1080 = vadd.xlane.f32.xlu0 %v1055
        %v1081 = vpop.xlane.xlu0 %1080
        %1082 = vadd.xlane.f32.xlu0 %v1056
        %v1083 = vpop.xlane.xlu0 %1082
        %1084 = vadd.xlane.f32.xlu0 %v1057
        %v1085 = vpop.xlane.xlu0 %1084
        %1086 = vadd.xlane.f32.xlu0 %v1058
        %v1087 = vpop.xlane.xlu0 %1086
        %1088 = vadd.xlane.f32.xlu0 %v1059
        %v1089 = vpop.xlane.xlu0 %1088
        %1090 = vadd.xlane.f32.xlu0 %v1060
        %v1091 = vpop.xlane.xlu0 %1090
        %1092 = vadd.xlane.f32.xlu0 %v1061
        %v1093 = vpop.xlane.xlu0 %1092
        %v1094 = vrcp.pop %v1063
        %v1095 = vrcp.pop %v1065
        %v1096 = vrcp.pop %v1067
        %v1097 = vrcp.pop %v1069
        %v1098 = vrcp.pop %v1071
        %v1099 = vrcp.pop %v1073
        %v1100 = vrcp.pop %v1075
        %v1101 = vrcp.pop %v1077
        %v1102 = vrcp.pop %v1079
        %v1103 = vrcp.pop %v1081
        %v1104 = vrcp.pop %v1083
        %v1105 = vrcp.pop %v1085
        %v1106 = vrcp.pop %v1087
        %v1107 = vrcp.pop %v1089
        %v1108 = vrcp.pop %v1091
        %v1109 = vrcp.pop %v1093
        %v1110 = vmul.f32 %v1046, %v1094
        %v1111 = vmul.f32 %v1047, %v1095
        %v1112 = vmul.f32 %v1048, %v1096
        %v1113 = vmul.f32 %v1049, %v1097
        %v1114 = vmul.f32 %v1050, %v1098
        %v1115 = vmul.f32 %v1051, %v1099
        %v1116 = vmul.f32 %v1052, %v1100
        %v1117 = vmul.f32 %v1053, %v1101
        %v1118 = vmul.f32 %v1054, %v1102
        %v1119 = vmul.f32 %v1055, %v1103
        %v1120 = vmul.f32 %v1056, %v1104
        %v1121 = vmul.f32 %v1057, %v1105
        %v1122 = vmul.f32 %v1058, %v1106
        %v1123 = vmul.f32 %v1059, %v1107
        %v1124 = vmul.f32 %v1060, %v1108
        %v1125 = vmul.f32 %v1061, %v1109
        %v1126 = vadd.f32 %v982, %v1110
        %v1127 = vadd.f32 %v983, %v1111
        %v1128 = vadd.f32 %v984, %v1112
        %v1129 = vadd.f32 %v985, %v1113
        %v1130 = vadd.f32 %v986, %v1114
        %v1131 = vadd.f32 %v987, %v1115
        %v1132 = vadd.f32 %v988, %v1116
        %v1133 = vadd.f32 %v989, %v1117
        %v1134 = vadd.f32 %v990, %v1118
        %v1135 = vadd.f32 %v991, %v1119
        %v1136 = vadd.f32 %v992, %v1120
        %v1137 = vadd.f32 %v993, %v1121
        %v1138 = vadd.f32 %v994, %v1122
        %v1139 = vadd.f32 %v995, %v1123
        %v1140 = vadd.f32 %v996, %v1124
        %v1141 = vadd.f32 %v997, %v1125
        %v1142 = vsub.f32 1.0, %v1110
        %v1143 = vsub.f32 1.0, %v1111
        %v1144 = vsub.f32 1.0, %v1112
        %v1145 = vsub.f32 1.0, %v1113
        %v1146 = vsub.f32 1.0, %v1114
        %v1147 = vsub.f32 1.0, %v1115
        %v1148 = vsub.f32 1.0, %v1116
        %v1149 = vsub.f32 1.0, %v1117
        %v1150 = vsub.f32 1.0, %v1118
        %v1151 = vsub.f32 1.0, %v1119
        %v1152 = vsub.f32 1.0, %v1120
        %v1153 = vsub.f32 1.0, %v1121
        %v1154 = vsub.f32 1.0, %v1122
        %v1155 = vsub.f32 1.0, %v1123
        %v1156 = vsub.f32 1.0, %v1124
        %v1157 = vsub.f32 1.0, %v1125
        %v1158 = vmax.f32 %v1142, 1.1754944e-38
        %v1159 = vmax.f32 %v1143, 1.1754944e-38
        %v1160 = vmax.f32 %v1144, 1.1754944e-38
        %v1161 = vmax.f32 %v1145, 1.1754944e-38
        %v1162 = vmax.f32 %v1146, 1.1754944e-38
        %v1163 = vmax.f32 %v1147, 1.1754944e-38
        %v1164 = vmax.f32 %v1148, 1.1754944e-38
        %v1165 = vmax.f32 %v1149, 1.1754944e-38
        %v1166 = vmax.f32 %v1150, 1.1754944e-38
        %v1167 = vmax.f32 %v1151, 1.1754944e-38
        %v1168 = vmax.f32 %v1152, 1.1754944e-38
        %v1169 = vmax.f32 %v1153, 1.1754944e-38
        %v1170 = vmax.f32 %v1154, 1.1754944e-38
        %v1171 = vmax.f32 %v1155, 1.1754944e-38
        %v1172 = vmax.f32 %v1156, 1.1754944e-38
        %v1173 = vmax.f32 %v1157, 1.1754944e-38
        %v1174 = vmul.f32 %v1030, %v1158
        %v1175 = vmul.f32 %v1031, %v1159
        %v1176 = vmul.f32 %v1032, %v1160
        %v1177 = vmul.f32 %v1033, %v1161
        %v1178 = vmul.f32 %v1034, %v1162
        %v1179 = vmul.f32 %v1035, %v1163
        %v1180 = vmul.f32 %v1036, %v1164
        %v1181 = vmul.f32 %v1037, %v1165
        %v1182 = vmul.f32 %v1038, %v1166
        %v1183 = vmul.f32 %v1039, %v1167
        %v1184 = vmul.f32 %v1040, %v1168
        %v1185 = vmul.f32 %v1041, %v1169
        %v1186 = vmul.f32 %v1042, %v1170
        %v1187 = vmul.f32 %v1043, %v1171
        %v1188 = vmul.f32 %v1044, %v1172
        %v1189 = vmul.f32 %v1045, %v1173
        %v1190 = vmul.f32 %v615, %v1174
        %v1191 = vmul.f32 %v617, %v1175
        %v1192 = vmul.f32 %v619, %v1176
        %v1193 = vmul.f32 %v621, %v1177
        %v1194 = vmul.f32 %v623, %v1178
        %v1195 = vmul.f32 %v625, %v1179
        %v1196 = vmul.f32 %v627, %v1180
        %v1197 = vmul.f32 %v629, %v1181
        %v1198 = vmul.f32 %v631, %v1182
        %v1199 = vmul.f32 %v633, %v1183
        %v1200 = vmul.f32 %v635, %v1184
        %v1201 = vmul.f32 %v637, %v1185
        %v1202 = vmul.f32 %v639, %v1186
        %v1203 = vmul.f32 %v641, %v1187
        %v1204 = vmul.f32 %v643, %v1188
        %v1205 = vmul.f32 %v645, %v1189
        %1206 = vadd.xlane.f32.xlu0 %v1190
        %v1207 = vpop.xlane.xlu0 %1206
        %1208 = vadd.xlane.f32.xlu0 %v1191
        %v1209 = vpop.xlane.xlu0 %1208
        %1210 = vadd.xlane.f32.xlu0 %v1192
        %v1211 = vpop.xlane.xlu0 %1210
        %1212 = vadd.xlane.f32.xlu0 %v1193
        %v1213 = vpop.xlane.xlu0 %1212
        %1214 = vadd.xlane.f32.xlu0 %v1194
        %v1215 = vpop.xlane.xlu0 %1214
        %1216 = vadd.xlane.f32.xlu0 %v1195
        %v1217 = vpop.xlane.xlu0 %1216
        %1218 = vadd.xlane.f32.xlu0 %v1196
        %v1219 = vpop.xlane.xlu0 %1218
        %1220 = vadd.xlane.f32.xlu0 %v1197
        %v1221 = vpop.xlane.xlu0 %1220
        %1222 = vadd.xlane.f32.xlu0 %v1198
        %v1223 = vpop.xlane.xlu0 %1222
        %1224 = vadd.xlane.f32.xlu0 %v1199
        %v1225 = vpop.xlane.xlu0 %1224
        %1226 = vadd.xlane.f32.xlu0 %v1200
        %v1227 = vpop.xlane.xlu0 %1226
        %1228 = vadd.xlane.f32.xlu0 %v1201
        %v1229 = vpop.xlane.xlu0 %1228
        %1230 = vadd.xlane.f32.xlu0 %v1202
        %v1231 = vpop.xlane.xlu0 %1230
        %1232 = vadd.xlane.f32.xlu0 %v1203
        %v1233 = vpop.xlane.xlu0 %1232
        %1234 = vadd.xlane.f32.xlu0 %v1204
        %v1235 = vpop.xlane.xlu0 %1234
        %1236 = vadd.xlane.f32.xlu0 %v1205
        %v1237 = vpop.xlane.xlu0 %1236
        %v1238 = vrcp.pop %v1207
        %v1239 = vrcp.pop %v1209
        %v1240 = vrcp.pop %v1211
        %v1241 = vrcp.pop %v1213
        %v1242 = vrcp.pop %v1215
        %v1243 = vrcp.pop %v1217
        %v1244 = vrcp.pop %v1219
        %v1245 = vrcp.pop %v1221
        %v1246 = vrcp.pop %v1223
        %v1247 = vrcp.pop %v1225
        %v1248 = vrcp.pop %v1227
        %v1249 = vrcp.pop %v1229
        %v1250 = vrcp.pop %v1231
        %v1251 = vrcp.pop %v1233
        %v1252 = vrcp.pop %v1235
        %v1253 = vrcp.pop %v1237
        %v1254 = vmul.f32 %v1190, %v1238
        %v1255 = vmul.f32 %v1191, %v1239
        %v1256 = vmul.f32 %v1192, %v1240
        %v1257 = vmul.f32 %v1193, %v1241
        %v1258 = vmul.f32 %v1194, %v1242
        %v1259 = vmul.f32 %v1195, %v1243
        %v1260 = vmul.f32 %v1196, %v1244
        %v1261 = vmul.f32 %v1197, %v1245
        %v1262 = vmul.f32 %v1198, %v1246
        %v1263 = vmul.f32 %v1199, %v1247
        %v1264 = vmul.f32 %v1200, %v1248
        %v1265 = vmul.f32 %v1201, %v1249
        %v1266 = vmul.f32 %v1202, %v1250
        %v1267 = vmul.f32 %v1203, %v1251
        %v1268 = vmul.f32 %v1204, %v1252
        %v1269 = vmul.f32 %v1205, %v1253
        %v1270 = vadd.f32 %v1126, %v1254
        %v1271 = vadd.f32 %v1127, %v1255
        %v1272 = vadd.f32 %v1128, %v1256
        %v1273 = vadd.f32 %v1129, %v1257
        %v1274 = vadd.f32 %v1130, %v1258
        %v1275 = vadd.f32 %v1131, %v1259
        %v1276 = vadd.f32 %v1132, %v1260
        %v1277 = vadd.f32 %v1133, %v1261
        %v1278 = vadd.f32 %v1134, %v1262
        %v1279 = vadd.f32 %v1135, %v1263
        %v1280 = vadd.f32 %v1136, %v1264
        %v1281 = vadd.f32 %v1137, %v1265
        %v1282 = vadd.f32 %v1138, %v1266
        %v1283 = vadd.f32 %v1139, %v1267
        %v1284 = vadd.f32 %v1140, %v1268
        %v1285 = vadd.f32 %v1141, %v1269
        %1286 = vst [vmem:[%s207] sm:$0xff] %v1270
        %1287 = vst [vmem:[%s207 + $0x8] sm:$0xff] %v1271
        %1288 = vst [vmem:[%s207 + $0x10] sm:$0xff] %v1272
        %1289 = vst [vmem:[%s207 + $0x18] sm:$0xff] %v1273
        %1290 = vst [vmem:[%s207 + $0x20] sm:$0xff] %v1274
        %1291 = vst [vmem:[%s207 + $0x28] sm:$0xff] %v1275
        %1292 = vst [vmem:[%s207 + $0x30] sm:$0xff] %v1276
        %1293 = vst [vmem:[%s207 + $0x38] sm:$0xff] %v1277
        %1294 = vst [vmem:[%s207 + $0x40] sm:$0xff] %v1278
        %1295 = vst [vmem:[%s207 + $0x48] sm:$0xff] %v1279
        %1296 = vst [vmem:[%s207 + $0x50] sm:$0xff] %v1280
        %1297 = vst [vmem:[%s207 + $0x58] sm:$0xff] %v1281
        %1298 = vst [vmem:[%s207 + $0x60] sm:$0xff] %v1282
        %1299 = vst [vmem:[%s207 + $0x68] sm:$0xff] %v1283
        %1300 = vst [vmem:[%s207 + $0x70] sm:$0xff] %v1284
        %1301 = vst [vmem:[%s207 + $0x78] sm:$0xff] %v1285
        %s1302 = sand.u32 %s120, 1
        %s1303 = scalar_lea.sflag [#allocation3], %s1302
        %s1304 = sand.u32 %s120, 1
        %s1305 = smul.addr %s1304, 128
        %s1306 = scalar_lea.vmem [#allocation2], %s1305
        // Predicated region
        $region37: #{tpu_custom_call.1} parent=35 // pred_check
          %p1307 = pneg %p130
        $region38: #{tpu_custom_call.1} parent=35 // pred_check_branch
          %1309 = sbr.rel (%p1307) target = $region40
        $region39: #{tpu_custom_call.1} parent=35 // pred_region
          %s1310 = smul.u32 16, %s18
          %s1312 = ssub.s32 2048, 2048
          %1313 = vsyncadd %s1303, %s1312
          %s1314 = smul.addr %s1310, 128
          %s1315 = scalar_lea.hbm %s4, %s1314
          %s1316 = sshll.u32 %s1306, 4
          %s1317 = int_to_ptr.vmem [resolvable:$true] %s1316
          %1322 = dma.vmem_to_hbm [thread:$0]  %s1317, 2048, %s1315, %s1303, 128, 128, 8
        $region40: #{tpu_custom_call.1} parent=35 // pred_fallthru
          _
      $region36: #{tpu_custom_call.1} parent=5 // pred_fallthru
        _
      %p1323 = scmp.le.s32.totalorder 2, %s13
      // Predicated region
      $region41: #{tpu_custom_call.1} parent=5 // pred_check
        %p1324 = pneg %p1323
      $region42: #{tpu_custom_call.1} parent=5 // pred_check_branch
        %1326 = sbr.rel (%p1324) target = $region44
      $region43: #{tpu_custom_call.1} parent=5 // pred_region
        %s1327 = ssub.s32 %s13, 2
        // Predicated region
        $region45: #{tpu_custom_call.1} parent=43 // pred_check
          %p1328 = pneg %p136
        $region46: #{tpu_custom_call.1} parent=43 // pred_check_branch
          %1330 = sbr.rel (%p1328) target = $region48
        $region47: #{tpu_custom_call.1} parent=43 // pred_region
          %s1331 = sand.u32 %s121, 1
          %s1332 = scalar_lea.sflag [#allocation3], %s1331
          %s1333 = sand.u32 %s121, 1
          %s1334 = smul.addr %s1333, 128
          %s1335 = scalar_lea.vmem [#allocation2], %s1334
          %1336 = dma.done %s1332, 2048
        $region48: #{tpu_custom_call.1} parent=43 // pred_fallthru
          _
      $region44: #{tpu_custom_call.1} parent=5 // pred_fallthru
        _
    $region6: #{tpu_custom_call.1} parent=1 // loop_footer
      %s17 = sadd.s32 1, %s13
    $region7: #{tpu_custom_call.1} parent=1 // loop_footer_branch
      %12 = sbr.rel target = $region3
    $region8: #{tpu_custom_call.1} parent=1 // loop_exit
      _
    %1337 = vsyncpa [#allocation3], 1
    %s1338 = scalar_lea.sflag [#allocation3], 1
    %1339 = vsyncpa %s1338, 1

</llo_original>
